<compile_context>
chip_gen: v7x
topology: tpu7x:2x2x1
jax: 0.10.0
libtpu: 0.0.40
codegen_flags: <defaults>
</compile_context>

<pallas_src>
import functools

import jax
import jax.numpy as jnp
from jax import lax
from jax.experimental import pallas as pl
from jax.experimental.pallas import tpu as pltpu


def _round_up(x, m):
    return (x + m - 1) // m * m


def _pick_block_b(batch):
    """Batch tile: up to 256 rows (MXU height on v6e/v7x), multiple of 8."""
    for cand in (256, 128, 64, 32, 16, 8):
        if batch >= cand and batch % cand == 0:
            return cand
    return batch  # full-extent block (always legal)


def _keyframe_lstm_kernel(
    x_ref,       # (Bb, input_size)
    w0_ref,      # (input_size, 4H)     embed folded into layer-0 W_ih
    wr_ref,      # (max(L-1,1), H|1, 4H) recurrent-layer input weights
    b_ref,       # (L, 1, 4H)           b_ih + b_hh (+ embed bias for layer 0)
    wh_ref,      # (H, P)               [w_out | w_delta | 0-pad]
    bh_ref,      # (1, P)
    out_ref,     # (Bb, P)              [tanh(out) | softmax(delta) | pad]
    *,
    n_layers: int,
    hidden_size: int,
    output_size: int,
    delta_size: int,
):
    H = hidden_size

    def cell(gates):
        # Full-width activations on the EUP, then contiguous-lane combines.
        sig = jax.nn.sigmoid(gates)          # (Bb, 4H) — whole vreg
        tnh = jnp.tanh(gates)                # (Bb, 4H) — whole vreg
        c_new = sig[:, 0 * H:1 * H] * tnh[:, 2 * H:3 * H]   # i * g  (c_prev == 0)
        return sig[:, 3 * H:4 * H] * jnp.tanh(c_new)        # o * tanh(c)

    # Layer 0 (embed folded in; h0 == c0 == 0 so no W_hh matmul, no f-gate).
    gates = jnp.dot(x_ref[...], w0_ref[...],
                    preferred_element_type=jnp.float32) + b_ref[0]
    h = cell(gates)

    for layer in range(1, n_layers):
        gates = jnp.dot(h, wr_ref[layer - 1],
                        preferred_element_type=jnp.float32) + b_ref[layer]
        h = cell(gates)

    # Fused heads: one MXU push, one lane-dense (Bb, P) store.
    logits = jnp.dot(h, wh_ref[...],
                     preferred_element_type=jnp.float32) + bh_ref[...]
    tanh_all = jnp.tanh(logits)

    lane = lax.broadcasted_iota(jnp.int32, logits.shape, 1)
    dmask = (lane >= output_size) & (lane < output_size + delta_size)

    masked = jnp.where(dmask, logits, -1e30)
    m = jnp.max(masked, axis=-1, keepdims=True)
    e = jnp.exp(masked - m)                               # pad/tanh lanes -> 0
    soft = e * pl.reciprocal(jnp.sum(e, axis=-1, keepdims=True), approx=True)

    out_ref[...] = jnp.where(dmask, soft, tanh_all).astype(out_ref.dtype)


def fold_params(params, *, n_layers, hidden_size, output_size, delta_size):
    """Algebraic fusions done once, outside the kernel (all exact in f32)."""
    H = hidden_size
    P = _round_up(output_size + delta_size, 128)

    # Embed folded into layer 0 (embed is linear, h0 == 0).
    w0 = params["w_embed"] @ params["w_ih"][0]                       # (in, 4H)
    b0 = (params["b_embed"] @ params["w_ih"][0]
          + params["b_ih"][0] + params["b_hh"][0])                   # (1, 4H)
    b_rest = params["b_ih"][1:] + params["b_hh"][1:]                 # (L-1,1,4H)
    b_all = jnp.concatenate([b0[None], b_rest], axis=0)              # (L, 1, 4H)

    if n_layers > 1:
        w_rest = params["w_ih"][1:]                                  # (L-1,H,4H)
    else:
        w_rest = jnp.zeros((1, 1, 4 * H), jnp.float32)               # never read

    pad = P - output_size - delta_size
    w_head = jnp.concatenate(
        [params["w_out"], params["w_delta"], jnp.zeros((H, pad), jnp.float32)],
        axis=1)                                                      # (H, P)
    b_head = jnp.concatenate(
        [params["b_out"], params["b_delta"], jnp.zeros((1, pad), jnp.float32)],
        axis=1)                                                      # (1, P)

    return {"w0": w0, "w_rest": w_rest, "b_all": b_all,
            "w_head": w_head, "b_head": b_head}


def keyframe_lstm_forward(x, params, *, n_layers, hidden_size,
                          output_size, delta_size):
    """Full forward (embed -> stacked LSTMCells -> tanh head & softmax head)."""
    H = hidden_size
    x2 = x.reshape(-1, x.shape[-1]).astype(jnp.float32)  # input.view(-1, input_size)
    B, in_size = x2.shape

    fp = fold_params(params, n_layers=n_layers, hidden_size=hidden_size,
                     output_size=output_size, delta_size=delta_size)
    P = fp["w_head"].shape[1]
    wr_shape = fp["w_rest"].shape
    Bb = _pick_block_b(B)

    kernel = functools.partial(
        _keyframe_lstm_kernel, n_layers=n_layers, hidden_size=H,
        output_size=output_size, delta_size=delta_size)

    slab = pl.pallas_call(
        kernel,
        out_shape=jax.ShapeDtypeStruct((B, P), jnp.float32),
        grid_spec=pltpu.PrefetchScalarGridSpec(
            num_scalar_prefetch=0,
            grid=(B // Bb,),
            in_specs=[
                pl.BlockSpec((Bb, in_size), lambda i: (i, 0)),
                pl.BlockSpec((in_size, 4 * H), lambda i: (0, 0)),
                pl.BlockSpec(wr_shape, lambda i: (0, 0, 0)),
                pl.BlockSpec((n_layers, 1, 4 * H), lambda i: (0, 0, 0)),
                pl.BlockSpec((H, P), lambda i: (0, 0)),
                pl.BlockSpec((1, P), lambda i: (0, 0)),
            ],
            out_specs=pl.BlockSpec((Bb, P), lambda i: (i, 0)),
        ),
        compiler_params=pltpu.CompilerParams(
            dimension_semantics=("parallel",)),
    )(x2, fp["w0"], fp["w_rest"], fp["b_all"], fp["w_head"], fp["b_head"])

    out = slab[:, :output_size]
    delta = slab[:, output_size:output_size + delta_size]
    return out, delta


def init_params(key, *, input_size, hidden_size, output_size, delta_size,
                n_layers, batch_size):
    """PyTorch-equivalent raw parameters (weights stored transposed: (in, out))."""
    ks = jax.random.split(key, 10)
    scale = 0.1
    H = hidden_size
    return {
        "w_embed": scale * jax.random.normal(ks[0], (input_size, H), jnp.float32),
        "b_embed": scale * jax.random.normal(ks[1], (1, H), jnp.float32),
        "w_ih": scale * jax.random.normal(ks[2], (n_layers, H, 4 * H), jnp.float32),
        "w_hh": scale * jax.random.normal(ks[3], (n_layers, H, 4 * H), jnp.float32),
        "b_ih": scale * jax.random.normal(ks[4], (n_layers, 1, 4 * H), jnp.float32),
        "b_hh": scale * jax.random.normal(ks[5], (n_layers, 1, 4 * H), jnp.float32),
        # init_hidden(): zeros (kept only for the reference path)
        "h0": jnp.zeros((n_layers, batch_size, H), jnp.float32),
        "c0": jnp.zeros((n_layers, batch_size, H), jnp.float32),
        "w_out": scale * jax.random.normal(ks[6], (H, output_size), jnp.float32),
        "b_out": scale * jax.random.normal(ks[7], (1, output_size), jnp.float32),
        "w_delta": scale * jax.random.normal(ks[8], (H, delta_size), jnp.float32),
        "b_delta": scale * jax.random.normal(ks[9], (1, delta_size), jnp.float32),
    }


def reference_forward(x, params, *, n_layers, hidden_size):
    """Pure-JAX reference reproducing the PyTorch forward (no fusions)."""
    H = hidden_size
    x2 = x.reshape(-1, x.shape[-1])
    h_in = x2 @ params["w_embed"] + params["b_embed"]
    for layer in range(n_layers):
        h_prev = params["h0"][layer]
        c_prev = params["c0"][layer]
        gates = (h_in @ params["w_ih"][layer] + params["b_ih"][layer]
                 + h_prev @ params["w_hh"][layer] + params["b_hh"][layer])
        i_g = jax.nn.sigmoid(gates[:, 0 * H:1 * H])
        f_g = jax.nn.sigmoid(gates[:, 1 * H:2 * H])
        g_g = jnp.tanh(gates[:, 2 * H:3 * H])
        o_g = jax.nn.sigmoid(gates[:, 3 * H:4 * H])
        c_new = f_g * c_prev + i_g * g_g
        h_in = o_g * jnp.tanh(c_new)
    out = jnp.tanh(h_in @ params["w_out"] + params["b_out"])
    logits = h_in @ params["w_delta"] + params["b_delta"]
    delta = jax.nn.softmax(logits, axis=-1)   # legacy nn.Softmax() -> dim=1
    return out, delta


if __name__ == "__main__":
    input_size = 16
    output_size = 16
    delta_size = 8
    hidden_size = 32
    n_layers = 2
    batch_size = 8  # flattened batch after input.view(-1, input_size)

    key = jax.random.PRNGKey(0)
    k_x, k_p = jax.random.split(key)
    # forward does input.view(-1, input_size); give it a non-flat input.
    x = jax.random.normal(k_x, (2, 4, input_size), jnp.float32)
    params = init_params(
        k_p,
        input_size=input_size,
        hidden_size=hidden_size,
        output_size=output_size,
        delta_size=delta_size,
        n_layers=n_layers,
        batch_size=batch_size,
    )

    out, delta = keyframe_lstm_forward(
        x, params,
        n_layers=n_layers,
        hidden_size=hidden_size,
        output_size=output_size,
        delta_size=delta_size,
    )
    out = jax.block_until_ready(out)
    delta = jax.block_until_ready(delta)

    ref_out, ref_delta = reference_forward(
        x, params, n_layers=n_layers, hidden_size=hidden_size
    )
    assert out.shape == (batch_size, output_size)
    assert delta.shape == (batch_size, delta_size)
    # out: only f32 reassociation from the embed fold.
    assert jnp.allclose(out, ref_out, atol=1e-4, rtol=1e-4)
    # delta: approx=True reciprocal on the softmax denominator -> slightly looser.
    assert jnp.allclose(delta, ref_delta, atol=2e-3, rtol=2e-3)

    print("KERNEL_OK")
</pallas_src>

<mosaic_0001>
module attributes {stable_mosaic.version = 11 : i64} {
  func.func @_keyframe_lstm_kernel(%arg0: i32, %arg1: memref<8x16xf32, #tpu.memory_space<vmem>>, %arg2: memref<16x128xf32, #tpu.memory_space<vmem>>, %arg3: memref<1x32x128xf32, #tpu.memory_space<vmem>>, %arg4: memref<2x1x128xf32, #tpu.memory_space<vmem>>, %arg5: memref<32x128xf32, #tpu.memory_space<vmem>>, %arg6: memref<1x128xf32, #tpu.memory_space<vmem>>, %arg7: memref<8x128xf32, #tpu.memory_space<vmem>>) attributes {dimension_semantics = [#tpu.dimension_semantics<parallel>], iteration_bounds = array<i64: 1>, scalar_prefetch = 0 : i64, scratch_operands = 0 : i64, tpu.core_type = #tpu.core_type<tc>, window_params = [{transform_indices = @transform_0, window_bounds = array<i64: 8, 16>}, {pipeline_mode = #tpu.pipeline_mode<synchronous>, transform_indices = @transform_1, window_bounds = array<i64: 16, 128>}, {pipeline_mode = #tpu.pipeline_mode<synchronous>, transform_indices = @transform_2, window_bounds = array<i64: 1, 32, 128>}, {pipeline_mode = #tpu.pipeline_mode<synchronous>, transform_indices = @transform_3, window_bounds = array<i64: 2, 1, 128>}, {pipeline_mode = #tpu.pipeline_mode<synchronous>, transform_indices = @transform_4, window_bounds = array<i64: 32, 128>}, {pipeline_mode = #tpu.pipeline_mode<synchronous>, transform_indices = @transform_5, window_bounds = array<i64: 1, 128>}, {transform_indices = @transform_6, window_bounds = array<i64: 8, 128>}]} {
    %c0 = arith.constant 0 : index
    %c0_0 = arith.constant 0 : index
    %0 = vector.load %arg1[%c0, %c0_0] : memref<8x16xf32, #tpu.memory_space<vmem>>, vector<8x16xf32>
    %c0_1 = arith.constant 0 : index
    %c0_2 = arith.constant 0 : index
    %1 = vector.load %arg2[%c0_1, %c0_2] : memref<16x128xf32, #tpu.memory_space<vmem>>, vector<16x128xf32>
    %cst = arith.constant dense<0.000000e+00> : vector<8x128xf32>
    %2 = tpu.matmul %0, %1, %cst {dimension_numbers = #tpu.dot_dimension_numbers<[1], [0], [0], [1], [0, 0, 1, 1], [], []>} : vector<8x16xf32>, vector<16x128xf32>, vector<8x128xf32> -> vector<8x128xf32>
    %c0_3 = arith.constant 0 : index
    %c0_4 = arith.constant 0 : index
    %c0_5 = arith.constant 0 : index
    %3 = vector.load %arg4[%c0_3, %c0_4, %c0_5] : memref<2x1x128xf32, #tpu.memory_space<vmem>>, vector<1x1x128xf32>
    %4 = vector.shape_cast %3 : vector<1x1x128xf32> to vector<1x128xf32>
    %5 = vector.broadcast %4 : vector<1x128xf32> to vector<8x128xf32>
    %6 = arith.addf %2, %5 : vector<8x128xf32>
    %7 = arith.negf %6 : vector<8x128xf32>
    %8 = math.exp %7 : vector<8x128xf32>
    %cst_6 = arith.constant 1.000000e+00 : f32
    %9 = vector.broadcast %cst_6 : f32 to vector<8x128xf32>
    %10 = arith.addf %9, %8 : vector<8x128xf32>
    %11 = arith.divf %9, %10 : vector<8x128xf32>
    %12 = math.tanh %6 : vector<8x128xf32>
    %13 = vector.extract_strided_slice %11 {offsets = [0, 0], sizes = [8, 32], strides = [1, 1]} : vector<8x128xf32> to vector<8x32xf32>
    %14 = vector.extract_strided_slice %12 {offsets = [0, 64], sizes = [8, 32], strides = [1, 1]} : vector<8x128xf32> to vector<8x32xf32>
    %15 = arith.mulf %13, %14 : vector<8x32xf32>
    %16 = vector.extract_strided_slice %11 {offsets = [0, 96], sizes = [8, 32], strides = [1, 1]} : vector<8x128xf32> to vector<8x32xf32>
    %17 = math.tanh %15 : vector<8x32xf32>
    %18 = arith.mulf %16, %17 : vector<8x32xf32>
    %c0_7 = arith.constant 0 : index
    %c0_8 = arith.constant 0 : index
    %c0_9 = arith.constant 0 : index
    %19 = vector.load %arg3[%c0_7, %c0_8, %c0_9] : memref<1x32x128xf32, #tpu.memory_space<vmem>>, vector<1x32x128xf32>
    %20 = vector.shape_cast %19 : vector<1x32x128xf32> to vector<32x128xf32>
    %cst_10 = arith.constant dense<0.000000e+00> : vector<8x128xf32>
    %21 = tpu.matmul %18, %20, %cst_10 {dimension_numbers = #tpu.dot_dimension_numbers<[1], [0], [0], [1], [0, 0, 1, 1], [], []>} : vector<8x32xf32>, vector<32x128xf32>, vector<8x128xf32> -> vector<8x128xf32>
    %c1 = arith.constant 1 : index
    %c0_11 = arith.constant 0 : index
    %c0_12 = arith.constant 0 : index
    %22 = vector.load %arg4[%c1, %c0_11, %c0_12] : memref<2x1x128xf32, #tpu.memory_space<vmem>>, vector<1x1x128xf32>
    %23 = vector.shape_cast %22 : vector<1x1x128xf32> to vector<1x128xf32>
    %24 = vector.broadcast %23 : vector<1x128xf32> to vector<8x128xf32>
    %25 = arith.addf %21, %24 : vector<8x128xf32>
    %26 = arith.negf %25 : vector<8x128xf32>
    %27 = math.exp %26 : vector<8x128xf32>
    %cst_13 = arith.constant 1.000000e+00 : f32
    %28 = vector.broadcast %cst_13 : f32 to vector<8x128xf32>
    %29 = arith.addf %28, %27 : vector<8x128xf32>
    %30 = arith.divf %28, %29 : vector<8x128xf32>
    %31 = math.tanh %25 : vector<8x128xf32>
    %32 = vector.extract_strided_slice %30 {offsets = [0, 0], sizes = [8, 32], strides = [1, 1]} : vector<8x128xf32> to vector<8x32xf32>
    %33 = vector.extract_strided_slice %31 {offsets = [0, 64], sizes = [8, 32], strides = [1, 1]} : vector<8x128xf32> to vector<8x32xf32>
    %34 = arith.mulf %32, %33 : vector<8x32xf32>
    %35 = vector.extract_strided_slice %30 {offsets = [0, 96], sizes = [8, 32], strides = [1, 1]} : vector<8x128xf32> to vector<8x32xf32>
    %36 = math.tanh %34 : vector<8x32xf32>
    %37 = arith.mulf %35, %36 : vector<8x32xf32>
    %c0_14 = arith.constant 0 : index
    %c0_15 = arith.constant 0 : index
    %38 = vector.load %arg5[%c0_14, %c0_15] : memref<32x128xf32, #tpu.memory_space<vmem>>, vector<32x128xf32>
    %cst_16 = arith.constant dense<0.000000e+00> : vector<8x128xf32>
    %39 = tpu.matmul %37, %38, %cst_16 {dimension_numbers = #tpu.dot_dimension_numbers<[1], [0], [0], [1], [0, 0, 1, 1], [], []>} : vector<8x32xf32>, vector<32x128xf32>, vector<8x128xf32> -> vector<8x128xf32>
    %c0_17 = arith.constant 0 : index
    %c0_18 = arith.constant 0 : index
    %40 = vector.load %arg6[%c0_17, %c0_18] : memref<1x128xf32, #tpu.memory_space<vmem>>, vector<1x128xf32>
    %41 = vector.broadcast %40 : vector<1x128xf32> to vector<8x128xf32>
    %42 = arith.addf %39, %41 : vector<8x128xf32>
    %43 = math.tanh %42 : vector<8x128xf32>
    %44 = tpu.iota {dimensions = array<i32: 1>} : vector<8x128xi32>
    %c16_i32 = arith.constant 16 : i32
    %45 = vector.broadcast %c16_i32 : i32 to vector<8x128xi32>
    %46 = arith.cmpi sge, %44, %45 : vector<8x128xi32>
    %c24_i32 = arith.constant 24 : i32
    %47 = vector.broadcast %c24_i32 : i32 to vector<8x128xi32>
    %48 = arith.cmpi slt, %44, %47 : vector<8x128xi32>
    %49 = arith.andi %46, %48 : vector<8x128xi1>
    %cst_19 = arith.constant -1.000000e+30 : f32
    %50 = vector.broadcast %cst_19 : f32 to vector<8x128xf32>
    %51 = arith.select %49, %42, %50 : vector<8x128xi1>, vector<8x128xf32>
    %cst_20 = arith.constant dense<0xFF800000> : vector<8xf32>
    %52 = vector.multi_reduction <maximumf>, %51, %cst_20 [1] : vector<8x128xf32> to vector<8xf32>
    %53 = vector.shape_cast %52 : vector<8xf32> to vector<8x1xf32>
    %54 = vector.broadcast %53 : vector<8x1xf32> to vector<8x128xf32>
    %55 = arith.subf %51, %54 : vector<8x128xf32>
    %56 = math.exp %55 : vector<8x128xf32>
    %cst_21 = arith.constant dense<0.000000e+00> : vector<8xf32>
    %57 = vector.multi_reduction <add>, %56, %cst_21 [1] : vector<8x128xf32> to vector<8xf32>
    %58 = vector.shape_cast %57 : vector<8xf32> to vector<8x1xf32>
    %59 = tpu.reciprocal %58 {approx = true} : vector<8x1xf32> -> vector<8x1xf32>
    %60 = vector.broadcast %59 : vector<8x1xf32> to vector<8x128xf32>
    %61 = arith.mulf %56, %60 : vector<8x128xf32>
    %62 = arith.select %49, %61, %43 : vector<8x128xi1>, vector<8x128xf32>
    %c0_22 = arith.constant 0 : index
    %c0_23 = arith.constant 0 : index
    %63 = vector.load %arg7[%c0_22, %c0_23] : memref<8x128xf32, #tpu.memory_space<vmem>>, vector<8x128xf32>
    tpu.vector_store %arg7[%c0_22, %c0_23], %62 {strides = array<i32>} : memref<8x128xf32, #tpu.memory_space<vmem>>, vector<8x128xf32>,
    return
  }
  func.func @transform_0(%arg0: i32) -> (i32, i32) {
    %c0_i32 = arith.constant 0 : i32
    %c0_i32_0 = arith.constant 0 : i32
    return %arg0, %c0_i32 : i32, i32
  }
  func.func @transform_1(%arg0: i32) -> (i32, i32) {
    %c0_i32 = arith.constant 0 : i32
    %c0_i32_0 = arith.constant 0 : i32
    %c0_i32_1 = arith.constant 0 : i32
    return %c0_i32, %c0_i32_0 : i32, i32
  }
  func.func @transform_2(%arg0: i32) -> (i32, i32, i32) {
    %c0_i32 = arith.constant 0 : i32
    %c0_i32_0 = arith.constant 0 : i32
    %c0_i32_1 = arith.constant 0 : i32
    %c0_i32_2 = arith.constant 0 : i32
    return %c0_i32, %c0_i32_0, %c0_i32_1 : i32, i32, i32
  }
  func.func @transform_3(%arg0: i32) -> (i32, i32, i32) {
    %c0_i32 = arith.constant 0 : i32
    %c0_i32_0 = arith.constant 0 : i32
    %c0_i32_1 = arith.constant 0 : i32
    %c0_i32_2 = arith.constant 0 : i32
    return %c0_i32, %c0_i32_0, %c0_i32_1 : i32, i32, i32
  }
  func.func @transform_4(%arg0: i32) -> (i32, i32) {
    %c0_i32 = arith.constant 0 : i32
    %c0_i32_0 = arith.constant 0 : i32
    %c0_i32_1 = arith.constant 0 : i32
    return %c0_i32, %c0_i32_0 : i32, i32
  }
  func.func @transform_5(%arg0: i32) -> (i32, i32) {
    %c0_i32 = arith.constant 0 : i32
    %c0_i32_0 = arith.constant 0 : i32
    %c0_i32_1 = arith.constant 0 : i32
    return %c0_i32, %c0_i32_0 : i32, i32
  }
  func.func @transform_6(%arg0: i32) -> (i32, i32) {
    %c0_i32 = arith.constant 0 : i32
    %c0_i32_0 = arith.constant 0 : i32
    return %arg0, %c0_i32 : i32, i32
  }
}

</mosaic_0001>

<llo_original>
// kernel: tpu_custom_call.1
$region0: #{tpu_custom_call.1}
  #allocation0 [shape = 'u32[]', space=smem, size = 0x4, offset = 0x4, fixed_abs, tag = 'smem constant byte address 0x4 - core index']
  #allocation1 [shape = 'u32[144,128]{1,0:T(1,128)}', space=vmem, size = 0x12000, scoped, tag = 'internal scratch']
  %s0 = inlined_call_operand.hbm [shape: f32[8,16], index: 0, kind: input, shape index: {}]
  %s1 = inlined_call_operand.hbm [shape: f32[16,128], index: 1, kind: input, shape index: {}]
  %s2 = inlined_call_operand.hbm [shape: f32[1,32,128], index: 2, kind: input, shape index: {}]
  %s3 = inlined_call_operand.vmem [shape: f32[2,1,128], index: 3, kind: input, shape index: {}]
  %s4 = inlined_call_operand.hbm [shape: f32[32,128], index: 4, kind: input, shape index: {}]
  %s5 = inlined_call_operand.vmem [shape: f32[1,128], index: 5, kind: input, shape index: {}]
  %s6 = inlined_call_operand.hbm [shape: f32[8,128], index: 6, kind: output, shape index: {}]
  %s7 = sld [smem:[#allocation0]]
  $region50: #{tpu_custom_call.1} parent=0
    _
  %s9 = ssub.s32 1, %s7
  %s10 = scalar_select 0, %s9, %s7
  $region1: #{tpu_custom_call.1} parent=0
    #allocation2 [shape = 'u8[4096]{0}', space=vmem, size = 0x1000, scoped, tag = 'input window, operand 0, single buffered']
    #allocation3 [shape = 's32[1]{0}', space=sflag, size = 0x4, scoped, tag = 'scoped memory for tpu_custom_call.1']
    #allocation4 [shape = 's32[1]{0}', space=sflag, size = 0x4, scoped, tag = 'scoped memory for tpu_custom_call.1']
    #allocation5 [shape = 'u8[8192]{0}', space=vmem, size = 0x2000, scoped, tag = 'input window, operand 1, single buffered']
    #allocation6 [shape = 's32[1]{0}', space=sflag, size = 0x4, scoped, tag = 'scoped memory for tpu_custom_call.1']
    #allocation7 [shape = 'u8[16384]{0}', space=vmem, size = 0x4000, scoped, tag = 'input window, operand 2, single buffered']
    #allocation8 [shape = 'u8[16384]{0}', space=vmem, size = 0x4000, scoped, tag = 'input window, operand 4, single buffered']
    #allocation9 [shape = 's32[1]{0}', space=sflag, size = 0x4, scoped, tag = 'scoped memory for tpu_custom_call.1']
    #allocation10 [shape = 'u8[4096]{0}', space=vmem, size = 0x1000, scoped, tag = 'output window, operand 0, single buffered']
    %11 = vsyncpa [#allocation3], 0
    %12 = vsyncpa [#allocation6], 0
    %13 = vsyncpa [#allocation9], 0
    %14 = vsyncpa [#allocation4], 0
    // Predicated region
    $region2: #{tpu_custom_call.1} parent=1 // pred_check
      _
    $region3: #{tpu_custom_call.1} parent=1 // pred_check_branch
      %16 = sbr.rel (0) target = $region5
    $region4: #{tpu_custom_call.1} parent=1 // pred_region
      %s18 = ssub.s32 128, 128
      %19 = vsyncadd [#allocation3], %s18
      %s21 = sshll.u32 [#allocation2], 4
      %s22 = int_to_ptr.vmem [resolvable:$true] %s21
      %24 = dma.hbm_to_vmem [thread:$0]  %s0, 128, %s22, [#allocation3]
    $region5: #{tpu_custom_call.1} parent=1 // pred_fallthru
      _
    // Predicated region
    $region6: #{tpu_custom_call.1} parent=1 // pred_check
      _
    $region7: #{tpu_custom_call.1} parent=1 // pred_check_branch
      %26 = sbr.rel (0) target = $region9
    $region8: #{tpu_custom_call.1} parent=1 // pred_region
      %s28 = ssub.s32 256, 256
      %29 = vsyncadd [#allocation6], %s28
      %s30 = sshll.u32 [#allocation5], 4
      %s31 = int_to_ptr.vmem [resolvable:$true] %s30
      %36 = dma.hbm_to_vmem [thread:$0]  %s1, 256, %s31, [#allocation6], 128, 128, 8
    $region9: #{tpu_custom_call.1} parent=1 // pred_fallthru
      _
    // Predicated region
    $region10: #{tpu_custom_call.1} parent=1 // pred_check
      _
    $region11: #{tpu_custom_call.1} parent=1 // pred_check_branch
      %38 = sbr.rel (0) target = $region13
    $region12: #{tpu_custom_call.1} parent=1 // pred_region
      %s40 = ssub.s32 512, 512
      %41 = vsyncadd [#allocation6], %s40
      %s42 = sshll.u32 [#allocation7], 4
      %s43 = int_to_ptr.vmem [resolvable:$true] %s42
      %48 = dma.hbm_to_vmem [thread:$0]  %s2, 512, %s43, [#allocation6], 128, 128, 8
    $region13: #{tpu_custom_call.1} parent=1 // pred_fallthru
      _
    // Predicated region
    $region14: #{tpu_custom_call.1} parent=1 // pred_check
      _
    $region15: #{tpu_custom_call.1} parent=1 // pred_check_branch
      %50 = sbr.rel (0) target = $region17
    $region16: #{tpu_custom_call.1} parent=1 // pred_region
      _
    $region17: #{tpu_custom_call.1} parent=1 // pred_fallthru
      _
    // Predicated region
    $region18: #{tpu_custom_call.1} parent=1 // pred_check
      _
    $region19: #{tpu_custom_call.1} parent=1 // pred_check_branch
      %52 = sbr.rel (0) target = $region21
    $region20: #{tpu_custom_call.1} parent=1 // pred_region
      %s54 = ssub.s32 512, 512
      %55 = vsyncadd [#allocation9], %s54
      %s56 = sshll.u32 [#allocation8], 4
      %s57 = int_to_ptr.vmem [resolvable:$true] %s56
      %62 = dma.hbm_to_vmem [thread:$0]  %s4, 512, %s57, [#allocation9], 128, 128, 8
    $region21: #{tpu_custom_call.1} parent=1 // pred_fallthru
      _
    // Predicated region
    $region22: #{tpu_custom_call.1} parent=1 // pred_check
      _
    $region23: #{tpu_custom_call.1} parent=1 // pred_check_branch
      %64 = sbr.rel (0) target = $region25
    $region24: #{tpu_custom_call.1} parent=1 // pred_region
      _
    $region25: #{tpu_custom_call.1} parent=1 // pred_fallthru
      _
    // Predicated region
    $region26: #{tpu_custom_call.1} parent=1 // pred_check
      _
    $region27: #{tpu_custom_call.1} parent=1 // pred_check_branch
      %66 = sbr.rel (0) target = $region29
    $region28: #{tpu_custom_call.1} parent=1 // pred_region
      %67 = dma.done [#allocation3], 128
    $region29: #{tpu_custom_call.1} parent=1 // pred_fallthru
      _
    // Predicated region
    $region30: #{tpu_custom_call.1} parent=1 // pred_check
      _
    $region31: #{tpu_custom_call.1} parent=1 // pred_check_branch
      %69 = sbr.rel (0) target = $region33
    $region32: #{tpu_custom_call.1} parent=1 // pred_region
      %70 = dma.done [#allocation6], 256
    $region33: #{tpu_custom_call.1} parent=1 // pred_fallthru
      _
    // Predicated region
    $region34: #{tpu_custom_call.1} parent=1 // pred_check
      _
    $region35: #{tpu_custom_call.1} parent=1 // pred_check_branch
      %72 = sbr.rel (0) target = $region37
    $region36: #{tpu_custom_call.1} parent=1 // pred_region
      %73 = dma.done [#allocation6], 512
    $region37: #{tpu_custom_call.1} parent=1 // pred_fallthru
      _
    // Predicated region
    $region38: #{tpu_custom_call.1} parent=1 // pred_check
      _
    $region39: #{tpu_custom_call.1} parent=1 // pred_check_branch
      %75 = sbr.rel (0) target = $region41
    $region40: #{tpu_custom_call.1} parent=1 // pred_region
      %76 = dma.done [#allocation9], 512
    $region41: #{tpu_custom_call.1} parent=1 // pred_fallthru
      _
    %v77 = vld [vmem:[#allocation2] sm:$0xff]
    %v78 = vld [vmem:[#allocation5] sm:$0xff]
    %v79 = vld [vmem:[#allocation5 + $0x8] sm:$0xff]
    %v80 = vld [vmem:[%s3] sm:$0x1]
    %v82 = vlaneseq
    %v83 = vshrl.u32 %v82, 7
    %v84 = vsub.s32 0, %v83
    %v85 = vrot.slane %v80, %v84
    %vm87 = vcmask 130048
    %v89 = vsel %vm87, %v77, 0
    %91 = vmatprep.subr.mxu0 0.0
    %92 = vmatpush1.msra.mxu0 %v78
    %93 = vmatprep.subr.mxu0 0.0
    %94 = vmatpush1.msra.mxu0 %v79
    %95 = vmatprep.subr.mxu0 0.0
    %96 = vmatpush1.msra.mxu0 0.0
    %97 = vmatprep.subr.mxu0 0.0
    %98 = vmatpush1.msra.mxu0 0.0
    %99 = vmatprep.subr.mxu0 0.0
    %100 = vmatpush1.msra.mxu0 0.0
    %101 = vmatprep.subr.mxu0 0.0
    %102 = vmatpush1.msra.mxu0 0.0
    %103 = vmatprep.subr.mxu0 0.0
    %104 = vmatpush1.msra.mxu0 0.0
    %105 = vmatprep.subr.mxu0 0.0
    %106 = vmatpush1.msra.mxu0 0.0
    %107 = vmatprep.subr.mxu0 0.0
    %108 = vmatpush1.msra.mxu0 0.0
    %109 = vmatprep.subr.mxu0 0.0
    %110 = vmatpush1.msra.mxu0 0.0
    %111 = vmatprep.subr.mxu0 0.0
    %112 = vmatpush1.msra.mxu0 0.0
    %113 = vmatprep.subr.mxu0 0.0
    %114 = vmatpush1.msra.mxu0 0.0
    %115 = vmatprep.subr.mxu0 0.0
    %116 = vmatpush1.msra.mxu0 0.0
    %117 = vmatprep.subr.mxu0 0.0
    %118 = vmatpush1.msra.mxu0 0.0
    %119 = vmatprep.subr.mxu0 0.0
    %120 = vmatpush1.msra.mxu0 0.0
    %121 = vmatprep.subr.mxu0 0.0
    %122 = vmatpush1.msra.mxu0 0.0
    %123 = vmatprep.subr.mxu0 0.0
    %124 = vmatpush1.msra.mxu0 0.0
    %125 = vmatprep.subr.mxu0 0.0
    %126 = vmatpush1.msra.mxu0 0.0
    %127 = vmatprep.subr.mxu0 0.0
    %128 = vmatpush1.msra.mxu0 0.0
    %129 = vmatprep.subr.mxu0 0.0
    %130 = vmatpush1.msra.mxu0 0.0
    %131 = vmatprep.subr.mxu0 0.0
    %132 = vmatpush1.msra.mxu0 0.0
    %133 = vmatprep.subr.mxu0 0.0
    %134 = vmatpush1.msra.mxu0 0.0
    %135 = vmatprep.subr.mxu0 0.0
    %136 = vmatpush1.msra.mxu0 0.0
    %137 = vmatprep.subr.mxu0 0.0
    %138 = vmatpush1.msra.mxu0 0.0
    %139 = vmatprep.subr.mxu0 0.0
    %140 = vmatpush1.msra.mxu0 0.0
    %141 = vmatprep.subr.mxu0 0.0
    %142 = vmatpush1.msra.mxu0 0.0
    %143 = vmatprep.subr.mxu0 0.0
    %144 = vmatpush1.msra.mxu0 0.0
    %145 = vmatprep.subr.mxu0 0.0
    %146 = vmatpush1.msra.mxu0 0.0
    %147 = vmatprep.subr.mxu0 0.0
    %148 = vmatpush1.msra.mxu0 0.0
    %149 = vmatprep.subr.mxu0 0.0
    %150 = vmatpush1.msra.mxu0 0.0
    %151 = vmatprep.subr.mxu0 0.0
    %152 = vmatpush1.msra.mxu0 0.0
    %153 = vmatprep.subr.mxu0 0.0
    %154 = vmatpush1.msra.mxu0 0.0
    %155 = vmatprep.mubr.f32.mxu0 0.0
    %156 = vmatmul.mubr.f32.gmra.mrb[0].mxu0 %v89
    %v157 = vpop.f32.mrb[0].mxu0
    %v158 = vadd.f32 %v85, %v157
    %v159 = vpop.f32.mrb[0].mxu0
    %160 = vdwg.mxu0
    %v161 = vxor.u32 %v158, 2147483648
    %v162 = vmul.f32 %v161, 1.442695
    %v163 = vpow.pop %v162
    %v164 = vadd.f32 %v163, 1.0
    %v165 = vrcp.pop %v164
    %v166 = vmul.f32 1.0, %v165
    %v167 = vtanh.pop %v158
    %169 = vrot.lane.b32.xlu0 %v167, 64
    %v170 = vpop.permute.xlu0 %169
    %v172 = vmul.f32 %v166, %v170
    %v173 = vtanh.pop %v172
    %175 = vrot.lane.b32.xlu0 %v173, 96
    %v176 = vpop.permute.xlu0 %175
    %v178 = vmul.f32 %v166, %v176
    %v179 = vld [vmem:[#allocation7] sm:$0xff]
    %v180 = vld [vmem:[#allocation7 + $0x8] sm:$0xff]
    %v181 = vld [vmem:[#allocation7 + $0x10] sm:$0xff]
    %v182 = vld [vmem:[#allocation7 + $0x18] sm:$0xff]
    %s183 = scalar_lea.vmem %s3, 1
    %v184 = vld [vmem:[%s183] sm:$0x1]
    %v186 = vlaneseq
    %v187 = vshrl.u32 %v186, 7
    %v188 = vsub.s32 0, %v187
    %v189 = vrot.slane %v184, %v188
    %192 = vrot.lane.b32.xlu0 %v178, 32
    %v193 = vpop.permute.xlu0 %192
    %vm194 = vcmask 261120
    %v195 = vsel %vm194, %v193, 0
    %197 = vmatprep.subr.mxu0 0.0
    %198 = vmatpush1.msra.mxu0 %v179
    %199 = vmatprep.subr.mxu0 0.0
    %200 = vmatpush1.msra.mxu0 %v180
    %201 = vmatprep.subr.mxu0 0.0
    %202 = vmatpush1.msra.mxu0 %v181
    %203 = vmatprep.subr.mxu0 0.0
    %204 = vmatpush1.msra.mxu0 %v182
    %205 = vmatprep.subr.mxu0 0.0
    %206 = vmatpush1.msra.mxu0 0.0
    %207 = vmatprep.subr.mxu0 0.0
    %208 = vmatpush1.msra.mxu0 0.0
    %209 = vmatprep.subr.mxu0 0.0
    %210 = vmatpush1.msra.mxu0 0.0
    %211 = vmatprep.subr.mxu0 0.0
    %212 = vmatpush1.msra.mxu0 0.0
    %213 = vmatprep.subr.mxu0 0.0
    %214 = vmatpush1.msra.mxu0 0.0
    %215 = vmatprep.subr.mxu0 0.0
    %216 = vmatpush1.msra.mxu0 0.0
    %217 = vmatprep.subr.mxu0 0.0
    %218 = vmatpush1.msra.mxu0 0.0
    %219 = vmatprep.subr.mxu0 0.0
    %220 = vmatpush1.msra.mxu0 0.0
    %221 = vmatprep.subr.mxu0 0.0
    %222 = vmatpush1.msra.mxu0 0.0
    %223 = vmatprep.subr.mxu0 0.0
    %224 = vmatpush1.msra.mxu0 0.0
    %225 = vmatprep.subr.mxu0 0.0
    %226 = vmatpush1.msra.mxu0 0.0
    %227 = vmatprep.subr.mxu0 0.0
    %228 = vmatpush1.msra.mxu0 0.0
    %229 = vmatprep.subr.mxu0 0.0
    %230 = vmatpush1.msra.mxu0 0.0
    %231 = vmatprep.subr.mxu0 0.0
    %232 = vmatpush1.msra.mxu0 0.0
    %233 = vmatprep.subr.mxu0 0.0
    %234 = vmatpush1.msra.mxu0 0.0
    %235 = vmatprep.subr.mxu0 0.0
    %236 = vmatpush1.msra.mxu0 0.0
    %237 = vmatprep.subr.mxu0 0.0
    %238 = vmatpush1.msra.mxu0 0.0
    %239 = vmatprep.subr.mxu0 0.0
    %240 = vmatpush1.msra.mxu0 0.0
    %241 = vmatprep.subr.mxu0 0.0
    %242 = vmatpush1.msra.mxu0 0.0
    %243 = vmatprep.subr.mxu0 0.0
    %244 = vmatpush1.msra.mxu0 0.0
    %245 = vmatprep.subr.mxu0 0.0
    %246 = vmatpush1.msra.mxu0 0.0
    %247 = vmatprep.subr.mxu0 0.0
    %248 = vmatpush1.msra.mxu0 0.0
    %249 = vmatprep.subr.mxu0 0.0
    %250 = vmatpush1.msra.mxu0 0.0
    %251 = vmatprep.subr.mxu0 0.0
    %252 = vmatpush1.msra.mxu0 0.0
    %253 = vmatprep.subr.mxu0 0.0
    %254 = vmatpush1.msra.mxu0 0.0
    %255 = vmatprep.subr.mxu0 0.0
    %256 = vmatpush1.msra.mxu0 0.0
    %257 = vmatprep.subr.mxu0 0.0
    %258 = vmatpush1.msra.mxu0 0.0
    %259 = vmatprep.subr.mxu0 0.0
    %260 = vmatpush1.msra.mxu0 0.0
    %261 = vmatprep.mubr.f32.mxu0 0.0
    %262 = vmatmul.mubr.f32.gmra.mrb[0].mxu0 %v195
    %v263 = vpop.f32.mrb[0].mxu0
    %v264 = vadd.f32 %v189, %v263
    %v265 = vpop.f32.mrb[0].mxu0
    %266 = vdwg.mxu0
    %v267 = vxor.u32 %v264, 2147483648
    %v268 = vmul.f32 %v267, 1.442695
    %v269 = vpow.pop %v268
    %v270 = vadd.f32 %v269, 1.0
    %v271 = vrcp.pop %v270
    %v272 = vmul.f32 1.0, %v271
    %v273 = vtanh.pop %v264
    %275 = vrot.lane.b32.xlu0 %v273, 64
    %v276 = vpop.permute.xlu0 %275
    %v278 = vmul.f32 %v272, %v276
    %v279 = vtanh.pop %v278
    %281 = vrot.lane.b32.xlu0 %v279, 96
    %v282 = vpop.permute.xlu0 %281
    %v284 = vmul.f32 %v272, %v282
    %v285 = vld [vmem:[#allocation8] sm:$0xff]
    %v286 = vld [vmem:[#allocation8 + $0x8] sm:$0xff]
    %v287 = vld [vmem:[#allocation8 + $0x10] sm:$0xff]
    %v288 = vld [vmem:[#allocation8 + $0x18] sm:$0xff]
    %v289 = vld [vmem:[%s5] sm:$0x1]
    %v291 = vlaneseq
    %v292 = vshrl.u32 %v291, 7
    %v293 = vsub.s32 0, %v292
    %v294 = vrot.slane %v289, %v293
    %297 = vrot.lane.b32.xlu0 %v284, 32
    %v298 = vpop.permute.xlu0 %297
    %v299 = vsel %vm194, %v298, 0
    %301 = vmatprep.subr.mxu0 0.0
    %302 = vmatpush1.msra.mxu0 %v285
    %303 = vmatprep.subr.mxu0 0.0
    %304 = vmatpush1.msra.mxu0 %v286
    %305 = vmatprep.subr.mxu0 0.0
    %306 = vmatpush1.msra.mxu0 %v287
    %307 = vmatprep.subr.mxu0 0.0
    %308 = vmatpush1.msra.mxu0 %v288
    %309 = vmatprep.subr.mxu0 0.0
    %310 = vmatpush1.msra.mxu0 0.0
    %311 = vmatprep.subr.mxu0 0.0
    %312 = vmatpush1.msra.mxu0 0.0
    %313 = vmatprep.subr.mxu0 0.0
    %314 = vmatpush1.msra.mxu0 0.0
    %315 = vmatprep.subr.mxu0 0.0
    %316 = vmatpush1.msra.mxu0 0.0
    %317 = vmatprep.subr.mxu0 0.0
    %318 = vmatpush1.msra.mxu0 0.0
    %319 = vmatprep.subr.mxu0 0.0
    %320 = vmatpush1.msra.mxu0 0.0
    %321 = vmatprep.subr.mxu0 0.0
    %322 = vmatpush1.msra.mxu0 0.0
    %323 = vmatprep.subr.mxu0 0.0
    %324 = vmatpush1.msra.mxu0 0.0
    %325 = vmatprep.subr.mxu0 0.0
    %326 = vmatpush1.msra.mxu0 0.0
    %327 = vmatprep.subr.mxu0 0.0
    %328 = vmatpush1.msra.mxu0 0.0
    %329 = vmatprep.subr.mxu0 0.0
    %330 = vmatpush1.msra.mxu0 0.0
    %331 = vmatprep.subr.mxu0 0.0
    %332 = vmatpush1.msra.mxu0 0.0
    %333 = vmatprep.subr.mxu0 0.0
    %334 = vmatpush1.msra.mxu0 0.0
    %335 = vmatprep.subr.mxu0 0.0
    %336 = vmatpush1.msra.mxu0 0.0
    %337 = vmatprep.subr.mxu0 0.0
    %338 = vmatpush1.msra.mxu0 0.0
    %339 = vmatprep.subr.mxu0 0.0
    %340 = vmatpush1.msra.mxu0 0.0
    %341 = vmatprep.subr.mxu0 0.0
    %342 = vmatpush1.msra.mxu0 0.0
    %343 = vmatprep.subr.mxu0 0.0
    %344 = vmatpush1.msra.mxu0 0.0
    %345 = vmatprep.subr.mxu0 0.0
    %346 = vmatpush1.msra.mxu0 0.0
    %347 = vmatprep.subr.mxu0 0.0
    %348 = vmatpush1.msra.mxu0 0.0
    %349 = vmatprep.subr.mxu0 0.0
    %350 = vmatpush1.msra.mxu0 0.0
    %351 = vmatprep.subr.mxu0 0.0
    %352 = vmatpush1.msra.mxu0 0.0
    %353 = vmatprep.subr.mxu0 0.0
    %354 = vmatpush1.msra.mxu0 0.0
    %355 = vmatprep.subr.mxu0 0.0
    %356 = vmatpush1.msra.mxu0 0.0
    %357 = vmatprep.subr.mxu0 0.0
    %358 = vmatpush1.msra.mxu0 0.0
    %359 = vmatprep.subr.mxu0 0.0
    %360 = vmatpush1.msra.mxu0 0.0
    %361 = vmatprep.subr.mxu0 0.0
    %362 = vmatpush1.msra.mxu0 0.0
    %363 = vmatprep.subr.mxu0 0.0
    %364 = vmatpush1.msra.mxu0 0.0
    %365 = vmatprep.mubr.f32.mxu0 0.0
    %366 = vmatmul.mubr.f32.gmra.mrb[0].mxu0 %v299
    %v367 = vpop.f32.mrb[0].mxu0
    %v368 = vadd.f32 %v294, %v367
    %v369 = vpop.f32.mrb[0].mxu0
    %370 = vdwg.mxu0
    %v371 = vtanh.pop %v368
    %v372 = vlaneseq
    %v373 = vand.u32 %v372, 127
    %vm374 = vcmp.ge.s32.totalorder %v373, 16
    %vm375 = vcmp.lt.s32.totalorder %v373, 24
    %vm376 = vmand %vm374, %vm375
    %v377 = vsel %vm376, %v368, -1e+30
    %378 = vmax.xlane.f32.xlu0 %v377
    %v379 = vpop.xlane.xlu0 %378
    %v380 = vsub.f32 %v377, %v379
    %v381 = vmul.f32 %v380, 1.442695
    %v382 = vpow.pop %v381
    %383 = vadd.xlane.f32.xlu0 %v382
    %v384 = vpop.xlane.xlu0 %383
    %v385 = vrcp.pop %v384
    %v386 = vmul.f32 %v382, %v385
    %v387 = vsel %vm376, %v386, %v371
    %388 = vst [vmem:[#allocation10] sm:$0xff] %v387
    // Predicated region
    $region42: #{tpu_custom_call.1} parent=1 // pred_check
      _
    $region43: #{tpu_custom_call.1} parent=1 // pred_check_branch
      %390 = sbr.rel (0) target = $region45
    $region44: #{tpu_custom_call.1} parent=1 // pred_region
      %s392 = ssub.s32 128, 128
      %393 = vsyncadd [#allocation4], %s392
      %s395 = sshll.u32 [#allocation10], 4
      %s396 = int_to_ptr.vmem [resolvable:$true] %s395
      %398 = dma.vmem_to_hbm [thread:$0]  %s396, 128, %s6, [#allocation4]
    $region45: #{tpu_custom_call.1} parent=1 // pred_fallthru
      _
    // Predicated region
    $region46: #{tpu_custom_call.1} parent=1 // pred_check
      _
    $region47: #{tpu_custom_call.1} parent=1 // pred_check_branch
      %400 = sbr.rel (0) target = $region49
    $region48: #{tpu_custom_call.1} parent=1 // pred_region
      %401 = dma.done [#allocation4], 128
    $region49: #{tpu_custom_call.1} parent=1 // pred_fallthru
      _
    %402 = vsyncpa [#allocation3], 1
    %403 = vsyncpa [#allocation6], 1
    %404 = vsyncpa [#allocation9], 1
    %405 = vsyncpa [#allocation4], 1

</llo_original>
